<compile_context>
chip_gen: v6e
topology: v6e:2x2x1
jax: 0.10.0
libtpu: 0.0.40
codegen_flags: <defaults>
</compile_context>

<pallas_src>
import functools
import math

import jax
import jax.numpy as jnp
from jax.experimental import pallas as pl
from jax.experimental.pallas import tpu as pltpu


def _round_up(x, m):
    return ((x + m - 1) // m) * m


def _embedding_gather_kernel(ids_ref, lut_ref, out_ref, rows_vmem, sem, *,
                             scale, tokens_per_tile, n_inflight):
    """Gather `tokens_per_tile` embedding rows from HBM, scale, store.

    ids_ref   : (n_pad,) int32 token ids in SMEM (scalar prefetch)
    lut_ref   : (vocab, D) embedding table left in HBM (pl.ANY)
    out_ref   : (T, D) output tile in VMEM
    rows_vmem : (T, D) gather scratch in VMEM (lut dtype)
    sem       : (n_inflight,) DMA semaphores (rotating, depth-n pipeline)
    """
    tile = pl.program_id(0)
    base = tile * tokens_per_tile

    def row_copy(r):
        tok = ids_ref[base + r]                      # cheap SMEM scalar read
        return pltpu.make_async_copy(
            lut_ref.at[pl.ds(tok, 1)],               # (1, D) HBM row
            rows_vmem.at[pl.ds(r, 1)],               # (1, D) VMEM row
            sem.at[r % n_inflight])

    # Prime the pipeline: n_inflight row fetches in flight.
    for r in range(n_inflight):                      # static, n_inflight <= 8
        row_copy(r).start()

    @pl.loop(0, tokens_per_tile)
    def _(r):
        row_copy(r).wait()

        @pl.when(r + n_inflight < tokens_per_tile)
        def _():
            row_copy(r + n_inflight).start()

    # Single scaled store of the whole tile (lane-dense for typical d_model).
    out_ref[...] = (rows_vmem[...].astype(jnp.float32) * scale).astype(out_ref.dtype)


def embeddings_forward(ids, lut, d_model, *, out_dtype=None,
                       block_tokens=256, max_inflight=8):
    """ids: (B, S) int token ids; lut: (vocab, d_model) embedding table."""
    B, S = ids.shape
    vocab, D = lut.shape
    assert D == d_model
    if out_dtype is None:
        out_dtype = lut.dtype        # nn.Embedding output dtype == weight dtype

    n_tok = B * S
    scale = math.sqrt(d_model)

    # Clamp so an out-of-range token id can never produce an OOB DMA.
    flat_ids = jnp.clip(ids.reshape(n_tok).astype(jnp.int32), 0, vocab - 1)

    # Tokens per grid step: multiple of 8 (sublane), capped by token count.
    T = min(block_tokens, _round_up(n_tok, 8))
    T = max(8, (T // 8) * 8)
    n_pad = _round_up(n_tok, T)
    if n_pad != n_tok:
        # Padded tail ids are 0; their gathers are wasted but sliced off below.
        flat_ids = jnp.pad(flat_ids, (0, n_pad - n_tok))
    num_tiles = n_pad // T
    n_inflight = min(max_inflight, T)

    itemsize_lut = jnp.dtype(lut.dtype).itemsize
    itemsize_out = jnp.dtype(out_dtype).itemsize

    # VMEM: gather scratch + double-buffered output tile + headroom.  No table
    # residency is required, so this stays small on every TPU generation.
    vmem_need = (T * D * itemsize_lut
                 + 2 * T * D * itemsize_out
                 + (2 << 20))
    vmem_limit = int(min(max(vmem_need, 16 << 20), 64 << 20))

    grid_spec = pltpu.PrefetchScalarGridSpec(
        num_scalar_prefetch=1,                              # ids -> SMEM
        grid=(num_tiles,),
        in_specs=[pl.BlockSpec(memory_space=pl.ANY)],       # LUT stays in HBM
        out_specs=pl.BlockSpec((T, D), lambda i, ids_sm: (i, 0)),
        scratch_shapes=[pltpu.VMEM((T, D), lut.dtype),
                        pltpu.SemaphoreType.DMA((n_inflight,))],
    )

    # Gather path: essentially zero FLOPs; bytes = ids + gathered rows + output.
    cost = pl.CostEstimate(
        flops=0,
        transcendentals=0,
        bytes_accessed=int(n_pad * 4
                           + n_pad * D * itemsize_lut
                           + n_pad * D * itemsize_out),
    )

    out_flat = pl.pallas_call(
        functools.partial(_embedding_gather_kernel, scale=scale,
                          tokens_per_tile=T, n_inflight=n_inflight),
        out_shape=jax.ShapeDtypeStruct((n_pad, D), out_dtype),
        grid_spec=grid_spec,
        compiler_params=pltpu.CompilerParams(
            dimension_semantics=("parallel",),
            vmem_limit_bytes=vmem_limit,
        ),
        cost_estimate=cost,
    )(flat_ids, lut)

    return out_flat[:n_tok].reshape(B, S, D)


if __name__ == "__main__":
    # Small shapes consistent with the module: batch=2, seq=8, d_model=32, vocab=64
    B, S, d_model, vocab = 2, 8, 32, 64

    key = jax.random.PRNGKey(0)
    k_lut, k_ids = jax.random.split(key)

    # nn.Embedding default init ~ N(0, 1); deterministic synthetic weights.
    lut = jax.random.normal(k_lut, (vocab, d_model), dtype=jnp.float32)
    ids = jax.random.randint(k_ids, (B, S), minval=0, maxval=vocab,
                             dtype=jnp.int32)

    fwd = jax.jit(functools.partial(embeddings_forward, d_model=d_model))
    out = fwd(ids, lut)
    out = jax.block_until_ready(out)

    # Reference check in plain JAX (DMA gather is exact, so tight tolerance).
    ref = jnp.take(lut, ids, axis=0) * math.sqrt(d_model)
    assert out.shape == (B, S, d_model), out.shape
    assert out.dtype == lut.dtype, out.dtype
    assert jnp.allclose(out, ref, atol=1e-6, rtol=1e-6), "mismatch vs reference"

    print("KERNEL_OK")
</pallas_src>

<mosaic_0001>
module attributes {stable_mosaic.version = 11 : i64} {
  func.func @_embedding_gather_kernel(%arg0: i32, %arg1: memref<16xi32, #tpu.memory_space<smem>>, %arg2: memref<64x32xf32, #tpu.memory_space<any>>, %arg3: memref<16x32xf32, #tpu.memory_space<vmem>>, %arg4: memref<16x32xf32, #tpu.memory_space<vmem>>, %arg5: memref<8x!tpu.dma_semaphore, #tpu.memory_space<semaphore_mem>>) attributes {dimension_semantics = [#tpu.dimension_semantics<parallel>], iteration_bounds = array<i64: 1>, scalar_prefetch = 1 : i64, scratch_operands = 2 : i64, tpu.core_type = #tpu.core_type<tc>, window_params = [{}, {transform_indices = @transform_1, window_bounds = array<i64: 16, 32>}]} {
    %c16_i32 = arith.constant 16 : i32
    %0 = arith.muli %arg0, %c16_i32 : i32
    %c0_i32 = arith.constant 0 : i32
    %1 = arith.addi %0, %c0_i32 : i32
    %2 = arith.index_cast %1 : i32 to index
    %3 = memref.load %arg1[%2] : memref<16xi32, #tpu.memory_space<smem>>
    %c0_i32_0 = arith.constant 0 : i32
    %c0_i32_1 = arith.constant 0 : i32
    %4 = tpu.memref_slice %arg2[%3, %c0_i32_1] : memref<64x32xf32, #tpu.memory_space<any>> -> memref<1x32xf32, #tpu.memory_space<any>>
    %c0_i32_2 = arith.constant 0 : i32
    %c0_i32_3 = arith.constant 0 : i32
    %5 = tpu.memref_slice %arg4[%c0_i32_2, %c0_i32_3] : memref<16x32xf32, #tpu.memory_space<vmem>> -> memref<1x32xf32, #tpu.memory_space<vmem>>
    %6 = tpu.memref_slice %arg5[%c0_i32_0] : memref<8x!tpu.dma_semaphore, #tpu.memory_space<semaphore_mem>> -> memref<1x!tpu.dma_semaphore, #tpu.memory_space<semaphore_mem>>
    %7 = tpu.memref_squeeze %6 : memref<1x!tpu.dma_semaphore, #tpu.memory_space<semaphore_mem>> -> memref<!tpu.dma_semaphore, #tpu.memory_space<semaphore_mem>>
    tpu.enqueue_dma source(%4 : memref<1x32xf32, #tpu.memory_space<any>>) target(%5 : memref<1x32xf32, #tpu.memory_space<vmem>>) target_semaphore(%7 : memref<!tpu.dma_semaphore, #tpu.memory_space<semaphore_mem>>)
    %c1_i32 = arith.constant 1 : i32
    %8 = arith.addi %0, %c1_i32 : i32
    %9 = arith.index_cast %8 : i32 to index
    %10 = memref.load %arg1[%9] : memref<16xi32, #tpu.memory_space<smem>>
    %c1_i32_4 = arith.constant 1 : i32
    %c0_i32_5 = arith.constant 0 : i32
    %11 = tpu.memref_slice %arg2[%10, %c0_i32_5] : memref<64x32xf32, #tpu.memory_space<any>> -> memref<1x32xf32, #tpu.memory_space<any>>
    %c1_i32_6 = arith.constant 1 : i32
    %c0_i32_7 = arith.constant 0 : i32
    %12 = tpu.memref_slice %arg4[%c1_i32_6, %c0_i32_7] : memref<16x32xf32, #tpu.memory_space<vmem>> -> memref<1x32xf32, #tpu.memory_space<vmem>>
    %13 = tpu.memref_slice %arg5[%c1_i32_4] : memref<8x!tpu.dma_semaphore, #tpu.memory_space<semaphore_mem>> -> memref<1x!tpu.dma_semaphore, #tpu.memory_space<semaphore_mem>>
    %14 = tpu.memref_squeeze %13 : memref<1x!tpu.dma_semaphore, #tpu.memory_space<semaphore_mem>> -> memref<!tpu.dma_semaphore, #tpu.memory_space<semaphore_mem>>
    tpu.enqueue_dma source(%11 : memref<1x32xf32, #tpu.memory_space<any>>) target(%12 : memref<1x32xf32, #tpu.memory_space<vmem>>) target_semaphore(%14 : memref<!tpu.dma_semaphore, #tpu.memory_space<semaphore_mem>>)
    %c2_i32 = arith.constant 2 : i32
    %15 = arith.addi %0, %c2_i32 : i32
    %16 = arith.index_cast %15 : i32 to index
    %17 = memref.load %arg1[%16] : memref<16xi32, #tpu.memory_space<smem>>
    %c2_i32_8 = arith.constant 2 : i32
    %c0_i32_9 = arith.constant 0 : i32
    %18 = tpu.memref_slice %arg2[%17, %c0_i32_9] : memref<64x32xf32, #tpu.memory_space<any>> -> memref<1x32xf32, #tpu.memory_space<any>>
    %c2_i32_10 = arith.constant 2 : i32
    %c0_i32_11 = arith.constant 0 : i32
    %19 = tpu.memref_slice %arg4[%c2_i32_10, %c0_i32_11] : memref<16x32xf32, #tpu.memory_space<vmem>> -> memref<1x32xf32, #tpu.memory_space<vmem>>
    %20 = tpu.memref_slice %arg5[%c2_i32_8] : memref<8x!tpu.dma_semaphore, #tpu.memory_space<semaphore_mem>> -> memref<1x!tpu.dma_semaphore, #tpu.memory_space<semaphore_mem>>
    %21 = tpu.memref_squeeze %20 : memref<1x!tpu.dma_semaphore, #tpu.memory_space<semaphore_mem>> -> memref<!tpu.dma_semaphore, #tpu.memory_space<semaphore_mem>>
    tpu.enqueue_dma source(%18 : memref<1x32xf32, #tpu.memory_space<any>>) target(%19 : memref<1x32xf32, #tpu.memory_space<vmem>>) target_semaphore(%21 : memref<!tpu.dma_semaphore, #tpu.memory_space<semaphore_mem>>)
    %c3_i32 = arith.constant 3 : i32
    %22 = arith.addi %0, %c3_i32 : i32
    %23 = arith.index_cast %22 : i32 to index
    %24 = memref.load %arg1[%23] : memref<16xi32, #tpu.memory_space<smem>>
    %c3_i32_12 = arith.constant 3 : i32
    %c0_i32_13 = arith.constant 0 : i32
    %25 = tpu.memref_slice %arg2[%24, %c0_i32_13] : memref<64x32xf32, #tpu.memory_space<any>> -> memref<1x32xf32, #tpu.memory_space<any>>
    %c3_i32_14 = arith.constant 3 : i32
    %c0_i32_15 = arith.constant 0 : i32
    %26 = tpu.memref_slice %arg4[%c3_i32_14, %c0_i32_15] : memref<16x32xf32, #tpu.memory_space<vmem>> -> memref<1x32xf32, #tpu.memory_space<vmem>>
    %27 = tpu.memref_slice %arg5[%c3_i32_12] : memref<8x!tpu.dma_semaphore, #tpu.memory_space<semaphore_mem>> -> memref<1x!tpu.dma_semaphore, #tpu.memory_space<semaphore_mem>>
    %28 = tpu.memref_squeeze %27 : memref<1x!tpu.dma_semaphore, #tpu.memory_space<semaphore_mem>> -> memref<!tpu.dma_semaphore, #tpu.memory_space<semaphore_mem>>
    tpu.enqueue_dma source(%25 : memref<1x32xf32, #tpu.memory_space<any>>) target(%26 : memref<1x32xf32, #tpu.memory_space<vmem>>) target_semaphore(%28 : memref<!tpu.dma_semaphore, #tpu.memory_space<semaphore_mem>>)
    %c4_i32 = arith.constant 4 : i32
    %29 = arith.addi %0, %c4_i32 : i32
    %30 = arith.index_cast %29 : i32 to index
    %31 = memref.load %arg1[%30] : memref<16xi32, #tpu.memory_space<smem>>
    %c4_i32_16 = arith.constant 4 : i32
    %c0_i32_17 = arith.constant 0 : i32
    %32 = tpu.memref_slice %arg2[%31, %c0_i32_17] : memref<64x32xf32, #tpu.memory_space<any>> -> memref<1x32xf32, #tpu.memory_space<any>>
    %c4_i32_18 = arith.constant 4 : i32
    %c0_i32_19 = arith.constant 0 : i32
    %33 = tpu.memref_slice %arg4[%c4_i32_18, %c0_i32_19] : memref<16x32xf32, #tpu.memory_space<vmem>> -> memref<1x32xf32, #tpu.memory_space<vmem>>
    %34 = tpu.memref_slice %arg5[%c4_i32_16] : memref<8x!tpu.dma_semaphore, #tpu.memory_space<semaphore_mem>> -> memref<1x!tpu.dma_semaphore, #tpu.memory_space<semaphore_mem>>
    %35 = tpu.memref_squeeze %34 : memref<1x!tpu.dma_semaphore, #tpu.memory_space<semaphore_mem>> -> memref<!tpu.dma_semaphore, #tpu.memory_space<semaphore_mem>>
    tpu.enqueue_dma source(%32 : memref<1x32xf32, #tpu.memory_space<any>>) target(%33 : memref<1x32xf32, #tpu.memory_space<vmem>>) target_semaphore(%35 : memref<!tpu.dma_semaphore, #tpu.memory_space<semaphore_mem>>)
    %c5_i32 = arith.constant 5 : i32
    %36 = arith.addi %0, %c5_i32 : i32
    %37 = arith.index_cast %36 : i32 to index
    %38 = memref.load %arg1[%37] : memref<16xi32, #tpu.memory_space<smem>>
    %c5_i32_20 = arith.constant 5 : i32
    %c0_i32_21 = arith.constant 0 : i32
    %39 = tpu.memref_slice %arg2[%38, %c0_i32_21] : memref<64x32xf32, #tpu.memory_space<any>> -> memref<1x32xf32, #tpu.memory_space<any>>
    %c5_i32_22 = arith.constant 5 : i32
    %c0_i32_23 = arith.constant 0 : i32
    %40 = tpu.memref_slice %arg4[%c5_i32_22, %c0_i32_23] : memref<16x32xf32, #tpu.memory_space<vmem>> -> memref<1x32xf32, #tpu.memory_space<vmem>>
    %41 = tpu.memref_slice %arg5[%c5_i32_20] : memref<8x!tpu.dma_semaphore, #tpu.memory_space<semaphore_mem>> -> memref<1x!tpu.dma_semaphore, #tpu.memory_space<semaphore_mem>>
    %42 = tpu.memref_squeeze %41 : memref<1x!tpu.dma_semaphore, #tpu.memory_space<semaphore_mem>> -> memref<!tpu.dma_semaphore, #tpu.memory_space<semaphore_mem>>
    tpu.enqueue_dma source(%39 : memref<1x32xf32, #tpu.memory_space<any>>) target(%40 : memref<1x32xf32, #tpu.memory_space<vmem>>) target_semaphore(%42 : memref<!tpu.dma_semaphore, #tpu.memory_space<semaphore_mem>>)
    %c6_i32 = arith.constant 6 : i32
    %43 = arith.addi %0, %c6_i32 : i32
    %44 = arith.index_cast %43 : i32 to index
    %45 = memref.load %arg1[%44] : memref<16xi32, #tpu.memory_space<smem>>
    %c6_i32_24 = arith.constant 6 : i32
    %c0_i32_25 = arith.constant 0 : i32
    %46 = tpu.memref_slice %arg2[%45, %c0_i32_25] : memref<64x32xf32, #tpu.memory_space<any>> -> memref<1x32xf32, #tpu.memory_space<any>>
    %c6_i32_26 = arith.constant 6 : i32
    %c0_i32_27 = arith.constant 0 : i32
    %47 = tpu.memref_slice %arg4[%c6_i32_26, %c0_i32_27] : memref<16x32xf32, #tpu.memory_space<vmem>> -> memref<1x32xf32, #tpu.memory_space<vmem>>
    %48 = tpu.memref_slice %arg5[%c6_i32_24] : memref<8x!tpu.dma_semaphore, #tpu.memory_space<semaphore_mem>> -> memref<1x!tpu.dma_semaphore, #tpu.memory_space<semaphore_mem>>
    %49 = tpu.memref_squeeze %48 : memref<1x!tpu.dma_semaphore, #tpu.memory_space<semaphore_mem>> -> memref<!tpu.dma_semaphore, #tpu.memory_space<semaphore_mem>>
    tpu.enqueue_dma source(%46 : memref<1x32xf32, #tpu.memory_space<any>>) target(%47 : memref<1x32xf32, #tpu.memory_space<vmem>>) target_semaphore(%49 : memref<!tpu.dma_semaphore, #tpu.memory_space<semaphore_mem>>)
    %c7_i32 = arith.constant 7 : i32
    %50 = arith.addi %0, %c7_i32 : i32
    %51 = arith.index_cast %50 : i32 to index
    %52 = memref.load %arg1[%51] : memref<16xi32, #tpu.memory_space<smem>>
    %c7_i32_28 = arith.constant 7 : i32
    %c0_i32_29 = arith.constant 0 : i32
    %53 = tpu.memref_slice %arg2[%52, %c0_i32_29] : memref<64x32xf32, #tpu.memory_space<any>> -> memref<1x32xf32, #tpu.memory_space<any>>
    %c7_i32_30 = arith.constant 7 : i32
    %c0_i32_31 = arith.constant 0 : i32
    %54 = tpu.memref_slice %arg4[%c7_i32_30, %c0_i32_31] : memref<16x32xf32, #tpu.memory_space<vmem>> -> memref<1x32xf32, #tpu.memory_space<vmem>>
    %55 = tpu.memref_slice %arg5[%c7_i32_28] : memref<8x!tpu.dma_semaphore, #tpu.memory_space<semaphore_mem>> -> memref<1x!tpu.dma_semaphore, #tpu.memory_space<semaphore_mem>>
    %56 = tpu.memref_squeeze %55 : memref<1x!tpu.dma_semaphore, #tpu.memory_space<semaphore_mem>> -> memref<!tpu.dma_semaphore, #tpu.memory_space<semaphore_mem>>
    tpu.enqueue_dma source(%53 : memref<1x32xf32, #tpu.memory_space<any>>) target(%54 : memref<1x32xf32, #tpu.memory_space<vmem>>) target_semaphore(%56 : memref<!tpu.dma_semaphore, #tpu.memory_space<semaphore_mem>>)
    %c0_i32_32 = arith.constant 0 : i32
    %c16_i32_33 = arith.constant 16 : i32
    %57 = arith.addi %c0_i32_32, %c16_i32_33 : i32
    %c1_i32_34 = arith.constant 1 : i32
    scf.for %arg6 = %c0_i32_32 to %57 step %c1_i32_34  : i32 {
      %c1_i32_39 = arith.constant 1 : i32
      %62 = arith.muli %arg6, %c1_i32_39 : i32
      %c0_i32_40 = arith.constant 0 : i32
      %63 = arith.addi %c0_i32_40, %62 : i32
      %64 = arith.addi %0, %63 : i32
      %65 = arith.index_cast %64 : i32 to index
      %66 = memref.load %arg1[%65] : memref<16xi32, #tpu.memory_space<smem>>
      %c8_i32 = arith.constant 8 : i32
      %c0_i32_41 = arith.constant 0 : i32
      %67 = arith.cmpi eq, %c8_i32, %c0_i32_41 : i32
      %c1_i32_42 = arith.constant 1 : i32
      %68 = arith.select %67, %c1_i32_42, %c8_i32 : i32
      %69 = arith.remsi %63, %68 : i32
      %c0_i32_43 = arith.constant 0 : i32
      %70 = arith.cmpi ne, %69, %c0_i32_43 : i32
      %c0_i32_44 = arith.constant 0 : i32
      %71 = arith.cmpi slt, %69, %c0_i32_44 : i32
      %c0_i32_45 = arith.constant 0 : i32
      %72 = arith.cmpi slt, %68, %c0_i32_45 : i32
      %73 = arith.xori %71, %72 : i1
      %74 = arith.andi %73, %70 : i1
      %75 = arith.addi %69, %68 : i32
      %76 = arith.select %74, %75, %69 : i32
      %c0_i32_46 = arith.constant 0 : i32
      %77 = tpu.memref_slice %arg2[%66, %c0_i32_46] : memref<64x32xf32, #tpu.memory_space<any>> -> memref<1x32xf32, #tpu.memory_space<any>>
      %c0_i32_47 = arith.constant 0 : i32
      %78 = tpu.memref_slice %arg4[%63, %c0_i32_47] : memref<16x32xf32, #tpu.memory_space<vmem>> -> memref<1x32xf32, #tpu.memory_space<vmem>>
      %79 = tpu.memref_slice %arg5[%76] : memref<8x!tpu.dma_semaphore, #tpu.memory_space<semaphore_mem>> -> memref<1x!tpu.dma_semaphore, #tpu.memory_space<semaphore_mem>>
      %80 = tpu.memref_squeeze %79 : memref<1x!tpu.dma_semaphore, #tpu.memory_space<semaphore_mem>> -> memref<!tpu.dma_semaphore, #tpu.memory_space<semaphore_mem>>
      tpu.wait_dma2 semaphore(%80 : memref<!tpu.dma_semaphore, #tpu.memory_space<semaphore_mem>>) src(%77 : memref<1x32xf32, #tpu.memory_space<any>>) dst(%78 : memref<1x32xf32, #tpu.memory_space<vmem>>)
      %c8_i32_48 = arith.constant 8 : i32
      %81 = arith.addi %63, %c8_i32_48 : i32
      %c16_i32_49 = arith.constant 16 : i32
      %82 = arith.cmpi slt, %81, %c16_i32_49 : i32
      %83 = arith.extui %82 : i1 to i32
      %c0_i32_50 = arith.constant 0 : i32
      %84 = arith.cmpi ne, %83, %c0_i32_50 : i32
      scf.if %84 {
        %c8_i32_51 = arith.constant 8 : i32
        %85 = arith.addi %63, %c8_i32_51 : i32
        %86 = arith.addi %0, %85 : i32
        %87 = arith.index_cast %86 : i32 to index
        %88 = memref.load %arg1[%87] : memref<16xi32, #tpu.memory_space<smem>>
        %c8_i32_52 = arith.constant 8 : i32
        %c0_i32_53 = arith.constant 0 : i32
        %89 = arith.cmpi eq, %c8_i32_52, %c0_i32_53 : i32
        %c1_i32_54 = arith.constant 1 : i32
        %90 = arith.select %89, %c1_i32_54, %c8_i32_52 : i32
        %91 = arith.remsi %85, %90 : i32
        %c0_i32_55 = arith.constant 0 : i32
        %92 = arith.cmpi ne, %91, %c0_i32_55 : i32
        %c0_i32_56 = arith.constant 0 : i32
        %93 = arith.cmpi slt, %91, %c0_i32_56 : i32
        %c0_i32_57 = arith.constant 0 : i32
        %94 = arith.cmpi slt, %90, %c0_i32_57 : i32
        %95 = arith.xori %93, %94 : i1
        %96 = arith.andi %95, %92 : i1
        %97 = arith.addi %91, %90 : i32
        %98 = arith.select %96, %97, %91 : i32
        %c0_i32_58 = arith.constant 0 : i32
        %99 = tpu.memref_slice %arg2[%88, %c0_i32_58] : memref<64x32xf32, #tpu.memory_space<any>> -> memref<1x32xf32, #tpu.memory_space<any>>
        %c0_i32_59 = arith.constant 0 : i32
        %100 = tpu.memref_slice %arg4[%85, %c0_i32_59] : memref<16x32xf32, #tpu.memory_space<vmem>> -> memref<1x32xf32, #tpu.memory_space<vmem>>
        %101 = tpu.memref_slice %arg5[%98] : memref<8x!tpu.dma_semaphore, #tpu.memory_space<semaphore_mem>> -> memref<1x!tpu.dma_semaphore, #tpu.memory_space<semaphore_mem>>
        %102 = tpu.memref_squeeze %101 : memref<1x!tpu.dma_semaphore, #tpu.memory_space<semaphore_mem>> -> memref<!tpu.dma_semaphore, #tpu.memory_space<semaphore_mem>>
        tpu.enqueue_dma source(%99 : memref<1x32xf32, #tpu.memory_space<any>>) target(%100 : memref<1x32xf32, #tpu.memory_space<vmem>>) target_semaphore(%102 : memref<!tpu.dma_semaphore, #tpu.memory_space<semaphore_mem>>)
      } else {
      }
    }
    %c16_i32_35 = arith.constant 16 : i32
    %c0 = arith.constant 0 : index
    %c0_36 = arith.constant 0 : index
    %58 = vector.load %arg4[%c0, %c0_36] : memref<16x32xf32, #tpu.memory_space<vmem>>, vector<16x32xf32>
    %cst = arith.constant 5.65685415 : f32
    %59 = vector.broadcast %cst : f32 to vector<16x32xf32>
    %60 = arith.mulf %58, %59 : vector<16x32xf32>
    %c0_37 = arith.constant 0 : index
    %c0_38 = arith.constant 0 : index
    %61 = vector.load %arg3[%c0_37, %c0_38] : memref<16x32xf32, #tpu.memory_space<vmem>>, vector<16x32xf32>
    tpu.vector_store %arg3[%c0_37, %c0_38], %60 {strides = array<i32>} : memref<16x32xf32, #tpu.memory_space<vmem>>, vector<16x32xf32>,
    return
  }
  func.func @transform_1(%arg0: i32, %arg1: memref<16xi32, #tpu.memory_space<smem>>) -> (i32, i32) {
    %c0_i32 = arith.constant 0 : i32
    %c0_i32_0 = arith.constant 0 : i32
    return %arg0, %c0_i32 : i32, i32
  }
}

</mosaic_0001>

<llo_original>
// kernel: embeddings_forward.1
$region0: #{embeddings_forward.1}
  #allocation0 [shape = 'u32[]', space=smem, size = 0x4, offset = 0x4, fixed_abs, tag = 'smem constant byte address 0x4 - core index']
  #allocation1 [shape = 'u32[144,128]{1,0:T(1,128)}', space=vmem, size = 0x12000, scoped, tag = 'internal scratch']
  #allocation2 [shape = 'f32[16,32]{1,0:T(8,128)}', space=vmem, size = 0x2000, scoped, tag = 'scratch operand']
  #allocation3 [shape = 's32[8]{0}', space=sflag, size = 0x20, scoped, tag = 'scratch operand']
  #allocation4 [shape = 's32[1]{0}', space=sflag, size = 0x4, scoped, tag = 'scoped memory for embeddings_forward.1']
  #allocation5 [shape = 'u8[512]{0}', space=smem, size = 0x200, scoped, tag = 'prefetched SMEM operand 0']
  #allocation8 [shape = 's32[]', space=sflag, size = 0x4, offset = 0, fixed_abs, tag = 'sflag constant byte address 0x0 - dummy sync flag']
  #allocation9 [shape = 's32[]', space=sflag, size = 0x4, offset = 0, fixed_abs, tag = 'sflag constant byte address 0x0 - dummy sync flag']
  #allocation10 [shape = 's32[]', space=sflag, size = 0x4, offset = 0, fixed_abs, tag = 'sflag constant byte address 0x0 - dummy sync flag']
  #allocation11 [shape = 's32[]', space=sflag, size = 0x4, offset = 0, fixed_abs, tag = 'sflag constant byte address 0x0 - dummy sync flag']
  #allocation12 [shape = 's32[]', space=sflag, size = 0x4, offset = 0, fixed_abs, tag = 'sflag constant byte address 0x0 - dummy sync flag']
  #allocation13 [shape = 's32[]', space=sflag, size = 0x4, offset = 0, fixed_abs, tag = 'sflag constant byte address 0x0 - dummy sync flag']
  #allocation14 [shape = 's32[]', space=sflag, size = 0x4, offset = 0, fixed_abs, tag = 'sflag constant byte address 0x0 - dummy sync flag']
  #allocation15 [shape = 's32[]', space=sflag, size = 0x4, offset = 0, fixed_abs, tag = 'sflag constant byte address 0x0 - dummy sync flag']
  #allocation16 [shape = 's32[]', space=sflag, size = 0x4, offset = 0, fixed_abs, tag = 'sflag constant byte address 0x0 - dummy sync flag']
  %s0 = inlined_call_operand.vmem [shape: s32[16], index: 0, kind: input, shape index: {}]
  %s1 = inlined_call_operand.vmem [shape: f32[64,32], index: 1, kind: input, shape index: {}]
  %s2 = inlined_call_operand.hbm [shape: f32[16,32], index: 2, kind: output, shape index: {}]
  %s3 = sld [smem:[#allocation0]]
  $region291: #{embeddings_forward.1} parent=0
    _
  %s5 = ssub.s32 1, %s3
  %s6 = scalar_select 0, %s5, %s3
  %s7 = sshll.u32 %s0, 4
  %s8 = int_to_ptr.vmem [resolvable:$true] %s7
  %10 = dma.vmem_to_smem %s8, 16, [#allocation5], [#allocation4]
  %11 = dma.done [#allocation4], 16
  %12 = sfence
  $region1: #{embeddings_forward.1} parent=0
    #allocation6 [shape = 'u8[8192]{0}', space=vmem, size = 0x2000, scoped, tag = 'output window, operand 0, single buffered']
    #allocation7 [shape = 's32[1]{0}', space=sflag, size = 0x4, scoped, tag = 'scoped memory for embeddings_forward.1']
    %13 = vsyncpa [#allocation7], 0
    %s14 = smul.u32 0, 16
    %s15 = sld [smem:[#allocation5 + %s14]]
    %s16 = scalar_lea.vmem %s1, %s15
    %p18 = scmp.lt.u32.totalorder 1, 8
    %p19 = pneg %p18
    // Predicated region
    $region2: #{embeddings_forward.1} parent=1 // pred_check
      _
    $region3: #{embeddings_forward.1} parent=1 // pred_check_branch
      %21 = sbr.rel (%p18) target = $region5
    $region4: #{embeddings_forward.1} parent=1 // pred_region
      %s37 = sand.u32 1, 7
      %p38 = scmp.eq.s32.totalorder %s37, 0
      %p39 = pneg %p38
      // Predicated region
      $region17: #{embeddings_forward.1} parent=4 // pred_check
        _
      $region18: #{embeddings_forward.1} parent=4 // pred_check_branch
        %41 = sbr.rel (%p38) target = $region20
      $region19: #{embeddings_forward.1} parent=4 // pred_region
        %s42 = sand.u32 1, 7
        %s43 = ssub.s32 1, %s42
        %s44 = scalar_lea.vmem %s16, %s43
        %s45 = ssub.s32 1, %s42
        %s46 = scalar_lea.vmem [#allocation2], %s45
        %s47 = sshll.u32 1, %s42
        %s48 = ssub.s32 %s47, 1
        loop: start=0, step=1, limit=1
        $region21: #{embeddings_forward.1} parent=19 // loop_pre_header
          _
        $region22: #{embeddings_forward.1} parent=19 // loop_header
          %s50 = sphi 0, %s54
          %p51 = scmp.ge.s32.totalorder %s50, 1
          %s55 = sphi %s44, %s44
          %s56 = sphi %s46, %s46
        $region23: #{embeddings_forward.1} parent=19 // loop_header_branch
          %53 = sbr.rel (%p51) target = $region27
        $region24: #{embeddings_forward.1} parent=19 // loop_body
          %v57 = vld [vmem:[%s55] sm:%s48]
          %58 = vst [vmem:[%s56] sm:%s48] %v57
        $region25: #{embeddings_forward.1} parent=19 // loop_footer
          %s54 = sadd.s32 1, %s50
        $region26: #{embeddings_forward.1} parent=19 // loop_footer_branch
          %49 = sbr.rel target = $region22
        $region27: #{embeddings_forward.1} parent=19 // loop_exit
          _
      $region20: #{embeddings_forward.1} parent=4 // pred_fallthru
        _
    $region5: #{embeddings_forward.1} parent=1 // pred_fallthru
      _
    // Predicated region
    $region6: #{embeddings_forward.1} parent=1 // pred_check
      %p22 = pneg %p18
    $region7: #{embeddings_forward.1} parent=1 // pred_check_branch
      %24 = sbr.rel (%p22) target = $region9
    $region8: #{embeddings_forward.1} parent=1 // pred_region
      %s25 = sshll.u32 1, 1
      %s26 = ssub.s32 %s25, 1
      loop: start=0, step=1, limit=1
      $region10: #{embeddings_forward.1} parent=8 // loop_pre_header
        _
      $region11: #{embeddings_forward.1} parent=8 // loop_header
        %s28 = sphi 0, %s32
        %p29 = scmp.ge.s32.totalorder %s28, 1
        %s33 = sphi %s16, %s16
        %s34 = sphi [#allocation2], [#allocation2]
      $region12: #{embeddings_forward.1} parent=8 // loop_header_branch
        %31 = sbr.rel (%p29) target = $region16
      $region13: #{embeddings_forward.1} parent=8 // loop_body
        %v35 = vld [vmem:[%s33] sm:%s26]
        %36 = vst [vmem:[%s34] sm:%s26] %v35
      $region14: #{embeddings_forward.1} parent=8 // loop_footer
        %s32 = sadd.s32 1, %s28
      $region15: #{embeddings_forward.1} parent=8 // loop_footer_branch
        %27 = sbr.rel target = $region11
      $region16: #{embeddings_forward.1} parent=8 // loop_exit
        _
    $region9: #{embeddings_forward.1} parent=1 // pred_fallthru
      _
    // Predicated region
    $region28: #{embeddings_forward.1} parent=1 // pred_check
      _
    $region29: #{embeddings_forward.1} parent=1 // pred_check_branch
      %61 = sbr.rel (0) target = $region31
    $region30: #{embeddings_forward.1} parent=1 // pred_region
      %62 = vsyncadd [#allocation3], 16
    $region31: #{embeddings_forward.1} parent=1 // pred_fallthru
      _
    %s63 = sadd.s32 %s14, 1
    %s64 = sld [smem:[#allocation5 + %s63]]
    %s65 = scalar_lea.vmem %s1, %s64
    %s66 = scalar_lea.vmem [#allocation2], 1
    %s67 = scalar_lea.sflag [#allocation3], 1
    %p69 = scmp.lt.u32.totalorder 1, 8
    %p70 = pneg %p69
    // Predicated region
    $region32: #{embeddings_forward.1} parent=1 // pred_check
      _
    $region33: #{embeddings_forward.1} parent=1 // pred_check_branch
      %72 = sbr.rel (%p69) target = $region35
    $region34: #{embeddings_forward.1} parent=1 // pred_region
      %s88 = sand.u32 1, 7
      %p89 = scmp.eq.s32.totalorder %s88, 0
      %p90 = pneg %p89
      // Predicated region
      $region47: #{embeddings_forward.1} parent=34 // pred_check
        _
      $region48: #{embeddings_forward.1} parent=34 // pred_check_branch
        %92 = sbr.rel (%p89) target = $region50
      $region49: #{embeddings_forward.1} parent=34 // pred_region
        %s93 = sand.u32 1, 7
        %s94 = ssub.s32 1, %s93
        %s95 = scalar_lea.vmem %s65, %s94
        %s96 = ssub.s32 1, %s93
        %s97 = scalar_lea.vmem %s66, %s96 [#allocation2]
        %s98 = sshll.u32 1, %s93
        %s99 = ssub.s32 %s98, 1
        loop: start=0, step=1, limit=1
        $region51: #{embeddings_forward.1} parent=49 // loop_pre_header
          _
        $region52: #{embeddings_forward.1} parent=49 // loop_header
          %s101 = sphi 0, %s105
          %p102 = scmp.ge.s32.totalorder %s101, 1
          %s106 = sphi %s95, %s95
          %s107 = sphi %s97, %s97
        $region53: #{embeddings_forward.1} parent=49 // loop_header_branch
          %104 = sbr.rel (%p102) target = $region57
        $region54: #{embeddings_forward.1} parent=49 // loop_body
          %v108 = vld [vmem:[%s106] sm:%s99]
          %109 = vst [vmem:[%s107] sm:%s99] %v108
        $region55: #{embeddings_forward.1} parent=49 // loop_footer
          %s105 = sadd.s32 1, %s101
        $region56: #{embeddings_forward.1} parent=49 // loop_footer_branch
          %100 = sbr.rel target = $region52
        $region57: #{embeddings_forward.1} parent=49 // loop_exit
          _
      $region50: #{embeddings_forward.1} parent=34 // pred_fallthru
        _
    $region35: #{embeddings_forward.1} parent=1 // pred_fallthru
      _
    // Predicated region
    $region36: #{embeddings_forward.1} parent=1 // pred_check
      %p73 = pneg %p69
    $region37: #{embeddings_forward.1} parent=1 // pred_check_branch
      %75 = sbr.rel (%p73) target = $region39
    $region38: #{embeddings_forward.1} parent=1 // pred_region
      %s76 = sshll.u32 1, 1
      %s77 = ssub.s32 %s76, 1
      loop: start=0, step=1, limit=1
      $region40: #{embeddings_forward.1} parent=38 // loop_pre_header
        _
      $region41: #{embeddings_forward.1} parent=38 // loop_header
        %s79 = sphi 0, %s83
        %p80 = scmp.ge.s32.totalorder %s79, 1
        %s84 = sphi %s65, %s65
        %s85 = sphi %s66, %s66
      $region42: #{embeddings_forward.1} parent=38 // loop_header_branch
        %82 = sbr.rel (%p80) target = $region46
      $region43: #{embeddings_forward.1} parent=38 // loop_body
        %v86 = vld [vmem:[%s84] sm:%s77]
        %87 = vst [vmem:[%s85] sm:%s77] %v86
      $region44: #{embeddings_forward.1} parent=38 // loop_footer
        %s83 = sadd.s32 1, %s79
      $region45: #{embeddings_forward.1} parent=38 // loop_footer_branch
        %78 = sbr.rel target = $region41
      $region46: #{embeddings_forward.1} parent=38 // loop_exit
        _
    $region39: #{embeddings_forward.1} parent=1 // pred_fallthru
      _
    // Predicated region
    $region58: #{embeddings_forward.1} parent=1 // pred_check
      _
    $region59: #{embeddings_forward.1} parent=1 // pred_check_branch
      %112 = sbr.rel (0) target = $region61
    $region60: #{embeddings_forward.1} parent=1 // pred_region
      %113 = vsyncadd %s67, 16
    $region61: #{embeddings_forward.1} parent=1 // pred_fallthru
      _
    %s114 = sadd.s32 %s14, 2
    %s115 = sld [smem:[#allocation5 + %s114]]
    %s116 = scalar_lea.vmem %s1, %s115
    %s117 = scalar_lea.vmem [#allocation2], 2
    %s118 = scalar_lea.sflag [#allocation3], 2
    %p120 = scmp.lt.u32.totalorder 1, 8
    %p121 = pneg %p120
    // Predicated region
    $region62: #{embeddings_forward.1} parent=1 // pred_check
      _
    $region63: #{embeddings_forward.1} parent=1 // pred_check_branch
      %123 = sbr.rel (%p120) target = $region65
    $region64: #{embeddings_forward.1} parent=1 // pred_region
      %s139 = sand.u32 1, 7
      %p140 = scmp.eq.s32.totalorder %s139, 0
      %p141 = pneg %p140
      // Predicated region
      $region77: #{embeddings_forward.1} parent=64 // pred_check
        _
      $region78: #{embeddings_forward.1} parent=64 // pred_check_branch
        %143 = sbr.rel (%p140) target = $region80
      $region79: #{embeddings_forward.1} parent=64 // pred_region
        %s144 = sand.u32 1, 7
        %s145 = ssub.s32 1, %s144
        %s146 = scalar_lea.vmem %s116, %s145
        %s147 = ssub.s32 1, %s144
        %s148 = scalar_lea.vmem %s117, %s147 [#allocation2]
        %s149 = sshll.u32 1, %s144
        %s150 = ssub.s32 %s149, 1
        loop: start=0, step=1, limit=1
        $region81: #{embeddings_forward.1} parent=79 // loop_pre_header
          _
        $region82: #{embeddings_forward.1} parent=79 // loop_header
          %s152 = sphi 0, %s156
          %p153 = scmp.ge.s32.totalorder %s152, 1
          %s157 = sphi %s146, %s146
          %s158 = sphi %s148, %s148
        $region83: #{embeddings_forward.1} parent=79 // loop_header_branch
          %155 = sbr.rel (%p153) target = $region87
        $region84: #{embeddings_forward.1} parent=79 // loop_body
          %v159 = vld [vmem:[%s157] sm:%s150]
          %160 = vst [vmem:[%s158] sm:%s150] %v159
        $region85: #{embeddings_forward.1} parent=79 // loop_footer
          %s156 = sadd.s32 1, %s152
        $region86: #{embeddings_forward.1} parent=79 // loop_footer_branch
          %151 = sbr.rel target = $region82
        $region87: #{embeddings_forward.1} parent=79 // loop_exit
          _
      $region80: #{embeddings_forward.1} parent=64 // pred_fallthru
        _
    $region65: #{embeddings_forward.1} parent=1 // pred_fallthru
      _
    // Predicated region
    $region66: #{embeddings_forward.1} parent=1 // pred_check
      %p124 = pneg %p120
    $region67: #{embeddings_forward.1} parent=1 // pred_check_branch
      %126 = sbr.rel (%p124) target = $region69
    $region68: #{embeddings_forward.1} parent=1 // pred_region
      %s127 = sshll.u32 1, 1
      %s128 = ssub.s32 %s127, 1
      loop: start=0, step=1, limit=1
      $region70: #{embeddings_forward.1} parent=68 // loop_pre_header
        _
      $region71: #{embeddings_forward.1} parent=68 // loop_header
        %s130 = sphi 0, %s134
        %p131 = scmp.ge.s32.totalorder %s130, 1
        %s135 = sphi %s116, %s116
        %s136 = sphi %s117, %s117
      $region72: #{embeddings_forward.1} parent=68 // loop_header_branch
        %133 = sbr.rel (%p131) target = $region76
      $region73: #{embeddings_forward.1} parent=68 // loop_body
        %v137 = vld [vmem:[%s135] sm:%s128]
        %138 = vst [vmem:[%s136] sm:%s128] %v137
      $region74: #{embeddings_forward.1} parent=68 // loop_footer
        %s134 = sadd.s32 1, %s130
      $region75: #{embeddings_forward.1} parent=68 // loop_footer_branch
        %129 = sbr.rel target = $region71
      $region76: #{embeddings_forward.1} parent=68 // loop_exit
        _
    $region69: #{embeddings_forward.1} parent=1 // pred_fallthru
      _
    // Predicated region
    $region88: #{embeddings_forward.1} parent=1 // pred_check
      _
    $region89: #{embeddings_forward.1} parent=1 // pred_check_branch
      %163 = sbr.rel (0) target = $region91
    $region90: #{embeddings_forward.1} parent=1 // pred_region
      %164 = vsyncadd %s118, 16
    $region91: #{embeddings_forward.1} parent=1 // pred_fallthru
      _
    %s165 = sadd.s32 %s14, 3
    %s166 = sld [smem:[#allocation5 + %s165]]
    %s167 = scalar_lea.vmem %s1, %s166
    %s168 = scalar_lea.vmem [#allocation2], 3
    %s169 = scalar_lea.sflag [#allocation3], 3
    %p171 = scmp.lt.u32.totalorder 1, 8
    %p172 = pneg %p171
    // Predicated region
    $region92: #{embeddings_forward.1} parent=1 // pred_check
      _
    $region93: #{embeddings_forward.1} parent=1 // pred_check_branch
      %174 = sbr.rel (%p171) target = $region95
    $region94: #{embeddings_forward.1} parent=1 // pred_region
      %s190 = sand.u32 1, 7
      %p191 = scmp.eq.s32.totalorder %s190, 0
      %p192 = pneg %p191
      // Predicated region
      $region107: #{embeddings_forward.1} parent=94 // pred_check
        _
      $region108: #{embeddings_forward.1} parent=94 // pred_check_branch
        %194 = sbr.rel (%p191) target = $region110
      $region109: #{embeddings_forward.1} parent=94 // pred_region
        %s195 = sand.u32 1, 7
        %s196 = ssub.s32 1, %s195
        %s197 = scalar_lea.vmem %s167, %s196
        %s198 = ssub.s32 1, %s195
        %s199 = scalar_lea.vmem %s168, %s198 [#allocation2]
        %s200 = sshll.u32 1, %s195
        %s201 = ssub.s32 %s200, 1
        loop: start=0, step=1, limit=1
        $region111: #{embeddings_forward.1} parent=109 // loop_pre_header
          _
        $region112: #{embeddings_forward.1} parent=109 // loop_header
          %s203 = sphi 0, %s207
          %p204 = scmp.ge.s32.totalorder %s203, 1
          %s208 = sphi %s197, %s197
          %s209 = sphi %s199, %s199
        $region113: #{embeddings_forward.1} parent=109 // loop_header_branch
          %206 = sbr.rel (%p204) target = $region117
        $region114: #{embeddings_forward.1} parent=109 // loop_body
          %v210 = vld [vmem:[%s208] sm:%s201]
          %211 = vst [vmem:[%s209] sm:%s201] %v210
        $region115: #{embeddings_forward.1} parent=109 // loop_footer
          %s207 = sadd.s32 1, %s203
        $region116: #{embeddings_forward.1} parent=109 // loop_footer_branch
          %202 = sbr.rel target = $region112
        $region117: #{embeddings_forward.1} parent=109 // loop_exit
          _
      $region110: #{embeddings_forward.1} parent=94 // pred_fallthru
        _
    $region95: #{embeddings_forward.1} parent=1 // pred_fallthru
      _
    // Predicated region
    $region96: #{embeddings_forward.1} parent=1 // pred_check
      %p175 = pneg %p171
    $region97: #{embeddings_forward.1} parent=1 // pred_check_branch
      %177 = sbr.rel (%p175) target = $region99
    $region98: #{embeddings_forward.1} parent=1 // pred_region
      %s178 = sshll.u32 1, 1
      %s179 = ssub.s32 %s178, 1
      loop: start=0, step=1, limit=1
      $region100: #{embeddings_forward.1} parent=98 // loop_pre_header
        _
      $region101: #{embeddings_forward.1} parent=98 // loop_header
        %s181 = sphi 0, %s185
        %p182 = scmp.ge.s32.totalorder %s181, 1
        %s186 = sphi %s167, %s167
        %s187 = sphi %s168, %s168
      $region102: #{embeddings_forward.1} parent=98 // loop_header_branch
        %184 = sbr.rel (%p182) target = $region106
      $region103: #{embeddings_forward.1} parent=98 // loop_body
        %v188 = vld [vmem:[%s186] sm:%s179]
        %189 = vst [vmem:[%s187] sm:%s179] %v188
      $region104: #{embeddings_forward.1} parent=98 // loop_footer
        %s185 = sadd.s32 1, %s181
      $region105: #{embeddings_forward.1} parent=98 // loop_footer_branch
        %180 = sbr.rel target = $region101
      $region106: #{embeddings_forward.1} parent=98 // loop_exit
        _
    $region99: #{embeddings_forward.1} parent=1 // pred_fallthru
      _
    // Predicated region
    $region118: #{embeddings_forward.1} parent=1 // pred_check
      _
    $region119: #{embeddings_forward.1} parent=1 // pred_check_branch
      %214 = sbr.rel (0) target = $region121
    $region120: #{embeddings_forward.1} parent=1 // pred_region
      %215 = vsyncadd %s169, 16
    $region121: #{embeddings_forward.1} parent=1 // pred_fallthru
      _
    %s216 = sadd.s32 %s14, 4
    %s217 = sld [smem:[#allocation5 + %s216]]
    %s218 = scalar_lea.vmem %s1, %s217
    %s219 = scalar_lea.vmem [#allocation2], 4
    %s220 = scalar_lea.sflag [#allocation3], 4
    %p222 = scmp.lt.u32.totalorder 1, 8
    %p223 = pneg %p222
    // Predicated region
    $region122: #{embeddings_forward.1} parent=1 // pred_check
      _
    $region123: #{embeddings_forward.1} parent=1 // pred_check_branch
      %225 = sbr.rel (%p222) target = $region125
    $region124: #{embeddings_forward.1} parent=1 // pred_region
      %s241 = sand.u32 1, 7
      %p242 = scmp.eq.s32.totalorder %s241, 0
      %p243 = pneg %p242
      // Predicated region
      $region137: #{embeddings_forward.1} parent=124 // pred_check
        _
      $region138: #{embeddings_forward.1} parent=124 // pred_check_branch
        %245 = sbr.rel (%p242) target = $region140
      $region139: #{embeddings_forward.1} parent=124 // pred_region
        %s246 = sand.u32 1, 7
        %s247 = ssub.s32 1, %s246
        %s248 = scalar_lea.vmem %s218, %s247
        %s249 = ssub.s32 1, %s246
        %s250 = scalar_lea.vmem %s219, %s249 [#allocation2]
        %s251 = sshll.u32 1, %s246
        %s252 = ssub.s32 %s251, 1
        loop: start=0, step=1, limit=1
        $region141: #{embeddings_forward.1} parent=139 // loop_pre_header
          _
        $region142: #{embeddings_forward.1} parent=139 // loop_header
          %s254 = sphi 0, %s258
          %p255 = scmp.ge.s32.totalorder %s254, 1
          %s259 = sphi %s248, %s248
          %s260 = sphi %s250, %s250
        $region143: #{embeddings_forward.1} parent=139 // loop_header_branch
          %257 = sbr.rel (%p255) target = $region147
        $region144: #{embeddings_forward.1} parent=139 // loop_body
          %v261 = vld [vmem:[%s259] sm:%s252]
          %262 = vst [vmem:[%s260] sm:%s252] %v261
        $region145: #{embeddings_forward.1} parent=139 // loop_footer
          %s258 = sadd.s32 1, %s254
        $region146: #{embeddings_forward.1} parent=139 // loop_footer_branch
          %253 = sbr.rel target = $region142
        $region147: #{embeddings_forward.1} parent=139 // loop_exit
          _
      $region140: #{embeddings_forward.1} parent=124 // pred_fallthru
        _
    $region125: #{embeddings_forward.1} parent=1 // pred_fallthru
      _
    // Predicated region
    $region126: #{embeddings_forward.1} parent=1 // pred_check
      %p226 = pneg %p222
    $region127: #{embeddings_forward.1} parent=1 // pred_check_branch
      %228 = sbr.rel (%p226) target = $region129
    $region128: #{embeddings_forward.1} parent=1 // pred_region
      %s229 = sshll.u32 1, 1
      %s230 = ssub.s32 %s229, 1
      loop: start=0, step=1, limit=1
      $region130: #{embeddings_forward.1} parent=128 // loop_pre_header
        _
      $region131: #{embeddings_forward.1} parent=128 // loop_header
        %s232 = sphi 0, %s236
        %p233 = scmp.ge.s32.totalorder %s232, 1
        %s237 = sphi %s218, %s218
        %s238 = sphi %s219, %s219
      $region132: #{embeddings_forward.1} parent=128 // loop_header_branch
        %235 = sbr.rel (%p233) target = $region136
      $region133: #{embeddings_forward.1} parent=128 // loop_body
        %v239 = vld [vmem:[%s237] sm:%s230]
        %240 = vst [vmem:[%s238] sm:%s230] %v239
      $region134: #{embeddings_forward.1} parent=128 // loop_footer
        %s236 = sadd.s32 1, %s232
      $region135: #{embeddings_forward.1} parent=128 // loop_footer_branch
        %231 = sbr.rel target = $region131
      $region136: #{embeddings_forward.1} parent=128 // loop_exit
        _
    $region129: #{embeddings_forward.1} parent=1 // pred_fallthru
      _
    // Predicated region
    $region148: #{embeddings_forward.1} parent=1 // pred_check
      _
    $region149: #{embeddings_forward.1} parent=1 // pred_check_branch
      %265 = sbr.rel (0) target = $region151
    $region150: #{embeddings_forward.1} parent=1 // pred_region
      %266 = vsyncadd %s220, 16
    $region151: #{embeddings_forward.1} parent=1 // pred_fallthru
      _
    %s267 = sadd.s32 %s14, 5
    %s268 = sld [smem:[#allocation5 + %s267]]
    %s269 = scalar_lea.vmem %s1, %s268
    %s270 = scalar_lea.vmem [#allocation2], 5
    %s271 = scalar_lea.sflag [#allocation3], 5
    %p273 = scmp.lt.u32.totalorder 1, 8
    %p274 = pneg %p273
    // Predicated region
    $region152: #{embeddings_forward.1} parent=1 // pred_check
      _
    $region153: #{embeddings_forward.1} parent=1 // pred_check_branch
      %276 = sbr.rel (%p273) target = $region155
    $region154: #{embeddings_forward.1} parent=1 // pred_region
      %s292 = sand.u32 1, 7
      %p293 = scmp.eq.s32.totalorder %s292, 0
      %p294 = pneg %p293
      // Predicated region
      $region167: #{embeddings_forward.1} parent=154 // pred_check
        _
      $region168: #{embeddings_forward.1} parent=154 // pred_check_branch
        %296 = sbr.rel (%p293) target = $region170
      $region169: #{embeddings_forward.1} parent=154 // pred_region
        %s297 = sand.u32 1, 7
        %s298 = ssub.s32 1, %s297
        %s299 = scalar_lea.vmem %s269, %s298
        %s300 = ssub.s32 1, %s297
        %s301 = scalar_lea.vmem %s270, %s300 [#allocation2]
        %s302 = sshll.u32 1, %s297
        %s303 = ssub.s32 %s302, 1
        loop: start=0, step=1, limit=1
        $region171: #{embeddings_forward.1} parent=169 // loop_pre_header
          _
        $region172: #{embeddings_forward.1} parent=169 // loop_header
          %s305 = sphi 0, %s309
          %p306 = scmp.ge.s32.totalorder %s305, 1
          %s310 = sphi %s299, %s299
          %s311 = sphi %s301, %s301
        $region173: #{embeddings_forward.1} parent=169 // loop_header_branch
          %308 = sbr.rel (%p306) target = $region177
        $region174: #{embeddings_forward.1} parent=169 // loop_body
          %v312 = vld [vmem:[%s310] sm:%s303]
          %313 = vst [vmem:[%s311] sm:%s303] %v312
        $region175: #{embeddings_forward.1} parent=169 // loop_footer
          %s309 = sadd.s32 1, %s305
        $region176: #{embeddings_forward.1} parent=169 // loop_footer_branch
          %304 = sbr.rel target = $region172
        $region177: #{embeddings_forward.1} parent=169 // loop_exit
          _
      $region170: #{embeddings_forward.1} parent=154 // pred_fallthru
        _
    $region155: #{embeddings_forward.1} parent=1 // pred_fallthru
      _
    // Predicated region
    $region156: #{embeddings_forward.1} parent=1 // pred_check
      %p277 = pneg %p273
    $region157: #{embeddings_forward.1} parent=1 // pred_check_branch
      %279 = sbr.rel (%p277) target = $region159
    $region158: #{embeddings_forward.1} parent=1 // pred_region
      %s280 = sshll.u32 1, 1
      %s281 = ssub.s32 %s280, 1
      loop: start=0, step=1, limit=1
      $region160: #{embeddings_forward.1} parent=158 // loop_pre_header
        _
      $region161: #{embeddings_forward.1} parent=158 // loop_header
        %s283 = sphi 0, %s287
        %p284 = scmp.ge.s32.totalorder %s283, 1
        %s288 = sphi %s269, %s269
        %s289 = sphi %s270, %s270
      $region162: #{embeddings_forward.1} parent=158 // loop_header_branch
        %286 = sbr.rel (%p284) target = $region166
      $region163: #{embeddings_forward.1} parent=158 // loop_body
        %v290 = vld [vmem:[%s288] sm:%s281]
        %291 = vst [vmem:[%s289] sm:%s281] %v290
      $region164: #{embeddings_forward.1} parent=158 // loop_footer
        %s287 = sadd.s32 1, %s283
      $region165: #{embeddings_forward.1} parent=158 // loop_footer_branch
        %282 = sbr.rel target = $region161
      $region166: #{embeddings_forward.1} parent=158 // loop_exit
        _
    $region159: #{embeddings_forward.1} parent=1 // pred_fallthru
      _
    // Predicated region
    $region178: #{embeddings_forward.1} parent=1 // pred_check
      _
    $region179: #{embeddings_forward.1} parent=1 // pred_check_branch
      %316 = sbr.rel (0) target = $region181
    $region180: #{embeddings_forward.1} parent=1 // pred_region
      %317 = vsyncadd %s271, 16
    $region181: #{embeddings_forward.1} parent=1 // pred_fallthru
      _
    %s318 = sadd.s32 %s14, 6
    %s319 = sld [smem:[#allocation5 + %s318]]
    %s320 = scalar_lea.vmem %s1, %s319
    %s321 = scalar_lea.vmem [#allocation2], 6
    %s322 = scalar_lea.sflag [#allocation3], 6
    %p324 = scmp.lt.u32.totalorder 1, 8
    %p325 = pneg %p324
    // Predicated region
    $region182: #{embeddings_forward.1} parent=1 // pred_check
      _
    $region183: #{embeddings_forward.1} parent=1 // pred_check_branch
      %327 = sbr.rel (%p324) target = $region185
    $region184: #{embeddings_forward.1} parent=1 // pred_region
      %s343 = sand.u32 1, 7
      %p344 = scmp.eq.s32.totalorder %s343, 0
      %p345 = pneg %p344
      // Predicated region
      $region197: #{embeddings_forward.1} parent=184 // pred_check
        _
      $region198: #{embeddings_forward.1} parent=184 // pred_check_branch
        %347 = sbr.rel (%p344) target = $region200
      $region199: #{embeddings_forward.1} parent=184 // pred_region
        %s348 = sand.u32 1, 7
        %s349 = ssub.s32 1, %s348
        %s350 = scalar_lea.vmem %s320, %s349
        %s351 = ssub.s32 1, %s348
        %s352 = scalar_lea.vmem %s321, %s351 [#allocation2]
        %s353 = sshll.u32 1, %s348
        %s354 = ssub.s32 %s353, 1
        loop: start=0, step=1, limit=1
        $region201: #{embeddings_forward.1} parent=199 // loop_pre_header
          _
        $region202: #{embeddings_forward.1} parent=199 // loop_header
          %s356 = sphi 0, %s360
          %p357 = scmp.ge.s32.totalorder %s356, 1
          %s361 = sphi %s350, %s350
          %s362 = sphi %s352, %s352
        $region203: #{embeddings_forward.1} parent=199 // loop_header_branch
          %359 = sbr.rel (%p357) target = $region207
        $region204: #{embeddings_forward.1} parent=199 // loop_body
          %v363 = vld [vmem:[%s361] sm:%s354]
          %364 = vst [vmem:[%s362] sm:%s354] %v363
        $region205: #{embeddings_forward.1} parent=199 // loop_footer
          %s360 = sadd.s32 1, %s356
        $region206: #{embeddings_forward.1} parent=199 // loop_footer_branch
          %355 = sbr.rel target = $region202
        $region207: #{embeddings_forward.1} parent=199 // loop_exit
          _
      $region200: #{embeddings_forward.1} parent=184 // pred_fallthru
        _
    $region185: #{embeddings_forward.1} parent=1 // pred_fallthru
      _
    // Predicated region
    $region186: #{embeddings_forward.1} parent=1 // pred_check
      %p328 = pneg %p324
    $region187: #{embeddings_forward.1} parent=1 // pred_check_branch
      %330 = sbr.rel (%p328) target = $region189
    $region188: #{embeddings_forward.1} parent=1 // pred_region
      %s331 = sshll.u32 1, 1
      %s332 = ssub.s32 %s331, 1
      loop: start=0, step=1, limit=1
      $region190: #{embeddings_forward.1} parent=188 // loop_pre_header
        _
      $region191: #{embeddings_forward.1} parent=188 // loop_header
        %s334 = sphi 0, %s338
        %p335 = scmp.ge.s32.totalorder %s334, 1
        %s339 = sphi %s320, %s320
        %s340 = sphi %s321, %s321
      $region192: #{embeddings_forward.1} parent=188 // loop_header_branch
        %337 = sbr.rel (%p335) target = $region196
      $region193: #{embeddings_forward.1} parent=188 // loop_body
        %v341 = vld [vmem:[%s339] sm:%s332]
        %342 = vst [vmem:[%s340] sm:%s332] %v341
      $region194: #{embeddings_forward.1} parent=188 // loop_footer
        %s338 = sadd.s32 1, %s334
      $region195: #{embeddings_forward.1} parent=188 // loop_footer_branch
        %333 = sbr.rel target = $region191
      $region196: #{embeddings_forward.1} parent=188 // loop_exit
        _
    $region189: #{embeddings_forward.1} parent=1 // pred_fallthru
      _
    // Predicated region
    $region208: #{embeddings_forward.1} parent=1 // pred_check
      _
    $region209: #{embeddings_forward.1} parent=1 // pred_check_branch
      %367 = sbr.rel (0) target = $region211
    $region210: #{embeddings_forward.1} parent=1 // pred_region
      %368 = vsyncadd %s322, 16
    $region211: #{embeddings_forward.1} parent=1 // pred_fallthru
      _
    %s369 = sadd.s32 %s14, 7
    %s370 = sld [smem:[#allocation5 + %s369]]
    %s371 = scalar_lea.vmem %s1, %s370
    %s372 = scalar_lea.vmem [#allocation2], 7
    %s373 = scalar_lea.sflag [#allocation3], 7
    %p375 = scmp.lt.u32.totalorder 1, 8
    %p376 = pneg %p375
    // Predicated region
    $region212: #{embeddings_forward.1} parent=1 // pred_check
      _
    $region213: #{embeddings_forward.1} parent=1 // pred_check_branch
      %378 = sbr.rel (%p375) target = $region215
    $region214: #{embeddings_forward.1} parent=1 // pred_region
      %s394 = sand.u32 1, 7
      %p395 = scmp.eq.s32.totalorder %s394, 0
      %p396 = pneg %p395
      // Predicated region
      $region227: #{embeddings_forward.1} parent=214 // pred_check
        _
      $region228: #{embeddings_forward.1} parent=214 // pred_check_branch
        %398 = sbr.rel (%p395) target = $region230
      $region229: #{embeddings_forward.1} parent=214 // pred_region
        %s399 = sand.u32 1, 7
        %s400 = ssub.s32 1, %s399
        %s401 = scalar_lea.vmem %s371, %s400
        %s402 = ssub.s32 1, %s399
        %s403 = scalar_lea.vmem %s372, %s402 [#allocation2]
        %s404 = sshll.u32 1, %s399
        %s405 = ssub.s32 %s404, 1
        loop: start=0, step=1, limit=1
        $region231: #{embeddings_forward.1} parent=229 // loop_pre_header
          _
        $region232: #{embeddings_forward.1} parent=229 // loop_header
          %s407 = sphi 0, %s411
          %p408 = scmp.ge.s32.totalorder %s407, 1
          %s412 = sphi %s401, %s401
          %s413 = sphi %s403, %s403
        $region233: #{embeddings_forward.1} parent=229 // loop_header_branch
          %410 = sbr.rel (%p408) target = $region237
        $region234: #{embeddings_forward.1} parent=229 // loop_body
          %v414 = vld [vmem:[%s412] sm:%s405]
          %415 = vst [vmem:[%s413] sm:%s405] %v414
        $region235: #{embeddings_forward.1} parent=229 // loop_footer
          %s411 = sadd.s32 1, %s407
        $region236: #{embeddings_forward.1} parent=229 // loop_footer_branch
          %406 = sbr.rel target = $region232
        $region237: #{embeddings_forward.1} parent=229 // loop_exit
          _
      $region230: #{embeddings_forward.1} parent=214 // pred_fallthru
        _
    $region215: #{embeddings_forward.1} parent=1 // pred_fallthru
      _
    // Predicated region
    $region216: #{embeddings_forward.1} parent=1 // pred_check
      %p379 = pneg %p375
    $region217: #{embeddings_forward.1} parent=1 // pred_check_branch
      %381 = sbr.rel (%p379) target = $region219
    $region218: #{embeddings_forward.1} parent=1 // pred_region
      %s382 = sshll.u32 1, 1
      %s383 = ssub.s32 %s382, 1
      loop: start=0, step=1, limit=1
      $region220: #{embeddings_forward.1} parent=218 // loop_pre_header
        _
      $region221: #{embeddings_forward.1} parent=218 // loop_header
        %s385 = sphi 0, %s389
        %p386 = scmp.ge.s32.totalorder %s385, 1
        %s390 = sphi %s371, %s371
        %s391 = sphi %s372, %s372
      $region222: #{embeddings_forward.1} parent=218 // loop_header_branch
        %388 = sbr.rel (%p386) target = $region226
      $region223: #{embeddings_forward.1} parent=218 // loop_body
        %v392 = vld [vmem:[%s390] sm:%s383]
        %393 = vst [vmem:[%s391] sm:%s383] %v392
      $region224: #{embeddings_forward.1} parent=218 // loop_footer
        %s389 = sadd.s32 1, %s385
      $region225: #{embeddings_forward.1} parent=218 // loop_footer_branch
        %384 = sbr.rel target = $region221
      $region226: #{embeddings_forward.1} parent=218 // loop_exit
        _
    $region219: #{embeddings_forward.1} parent=1 // pred_fallthru
      _
    // Predicated region
    $region238: #{embeddings_forward.1} parent=1 // pred_check
      _
    $region239: #{embeddings_forward.1} parent=1 // pred_check_branch
      %418 = sbr.rel (0) target = $region241
    $region240: #{embeddings_forward.1} parent=1 // pred_region
      %419 = vsyncadd %s373, 16
    $region241: #{embeddings_forward.1} parent=1 // pred_fallthru
      _
    loop: start=0, step=1, limit=16
    $region242: #{embeddings_forward.1} parent=1 // loop_pre_header
      _
    $region243: #{embeddings_forward.1} parent=1 // loop_header
      %s421 = sphi 0, %s425
      %p422 = scmp.ge.s32.totalorder %s421, 16
    $region244: #{embeddings_forward.1} parent=1 // loop_header_branch
      %424 = sbr.rel (%p422) target = $region248
    $region245: #{embeddings_forward.1} parent=1 // loop_body
      %s426 = sadd.s32 %s14, %s421
      %s427 = sld [smem:[#allocation5 + %s426]]
      %p428 = scmp.lt.s32.totalorder %s421, 0
      %s429 = ssub.s32 0, %s421
      %s430 = scalar_select %p428, %s429, %s421
      %s431 = sand.u32 %s430, 7
      %s432 = ssub.s32 0, %s431
      %s433 = scalar_select %p428, %s432, %s431
      %p434 = scmp.ne.s32.totalorder %s433, 0
      %p435 = scmp.lt.s32.totalorder %s433, 0
      %p436 = pnand %p435, %p434
      %p437 = pneg %p436
      %s438 = sadd.s32 %s433, 8
      %s439 = scalar_select %p437, %s438, %s433
      %s440 = scalar_lea.sflag [#allocation3], %s439
      %s441 = smul.u32 1, 1
      %s442 = sshll.u32 %s441, 4
      %443 = dma.done %s440, %s442
      %s444 = sadd.s32 %s421, 8
      %p445 = scmp.lt.s32.totalorder %s444, 16
      // Predicated region
      $region249: #{embeddings_forward.1} parent=245 // pred_check
        %p446 = pneg %p445
      $region250: #{embeddings_forward.1} parent=245 // pred_check_branch
        %448 = sbr.rel (%p446) target = $region252
      $region251: #{embeddings_forward.1} parent=245 // pred_region
        %s449 = sadd.s32 %s14, %s444
        %s450 = sld [smem:[#allocation5 + %s449]]
        %p451 = scmp.lt.s32.totalorder %s444, 0
        %s452 = ssub.s32 0, %s444
        %s453 = scalar_select %p451, %s452, %s444
        %s454 = sand.u32 %s453, 7
        %s455 = ssub.s32 0, %s454
        %s456 = scalar_select %p451, %s455, %s454
        %p457 = scmp.ne.s32.totalorder %s456, 0
        %p458 = scmp.lt.s32.totalorder %s456, 0
        %p459 = pnand %p458, %p457
        %p460 = pneg %p459
        %s461 = sadd.s32 %s456, 8
        %s462 = scalar_select %p460, %s461, %s456
        %s463 = scalar_lea.vmem %s1, %s450
        %s464 = scalar_lea.vmem [#allocation2], %s444
        %s465 = scalar_lea.sflag [#allocation3], %s462
        %p467 = scmp.lt.u32.totalorder 1, 8
        %p468 = pneg %p467
        // Predicated region
        $region253: #{embeddings_forward.1} parent=251 // pred_check
          _
        $region254: #{embeddings_forward.1} parent=251 // pred_check_branch
          %470 = sbr.rel (%p467) target = $region256
        $region255: #{embeddings_forward.1} parent=251 // pred_region
          %s486 = sand.u32 1, 7
          %p487 = scmp.eq.s32.totalorder %s486, 0
          %p488 = pneg %p487
          // Predicated region
          $region268: #{embeddings_forward.1} parent=255 // pred_check
            _
          $region269: #{embeddings_forward.1} parent=255 // pred_check_branch
            %490 = sbr.rel (%p487) target = $region271
          $region270: #{embeddings_forward.1} parent=255 // pred_region
            %s491 = sand.u32 1, 7
            %s492 = ssub.s32 1, %s491
            %s493 = scalar_lea.vmem %s463, %s492
            %s494 = ssub.s32 1, %s491
            %s495 = scalar_lea.vmem %s464, %s494 [#allocation2]
            %s496 = sshll.u32 1, %s491
            %s497 = ssub.s32 %s496, 1
            loop: start=0, step=1, limit=1
            $region272: #{embeddings_forward.1} parent=270 // loop_pre_header
              _
            $region273: #{embeddings_forward.1} parent=270 // loop_header
              %s499 = sphi 0, %s503
              %p500 = scmp.ge.s32.totalorder %s499, 1
              %s504 = sphi %s493, %s493
              %s505 = sphi %s495, %s495
            $region274: #{embeddings_forward.1} parent=270 // loop_header_branch
              %502 = sbr.rel (%p500) target = $region278
            $region275: #{embeddings_forward.1} parent=270 // loop_body
              %v506 = vld [vmem:[%s504] sm:%s497]
              %507 = vst [vmem:[%s505] sm:%s497] %v506
            $region276: #{embeddings_forward.1} parent=270 // loop_footer
              %s503 = sadd.s32 1, %s499
            $region277: #{embeddings_forward.1} parent=270 // loop_footer_branch
              %498 = sbr.rel target = $region273
            $region278: #{embeddings_forward.1} parent=270 // loop_exit
              _
          $region271: #{embeddings_forward.1} parent=255 // pred_fallthru
            _
        $region256: #{embeddings_forward.1} parent=251 // pred_fallthru
          _
        // Predicated region
        $region257: #{embeddings_forward.1} parent=251 // pred_check
          %p471 = pneg %p467
        $region258: #{embeddings_forward.1} parent=251 // pred_check_branch
          %473 = sbr.rel (%p471) target = $region260
        $region259: #{embeddings_forward.1} parent=251 // pred_region
          %s474 = sshll.u32 1, 1
          %s475 = ssub.s32 %s474, 1
          loop: start=0, step=1, limit=1
          $region261: #{embeddings_forward.1} parent=259 // loop_pre_header
            _
          $region262: #{embeddings_forward.1} parent=259 // loop_header
            %s477 = sphi 0, %s481
            %p478 = scmp.ge.s32.totalorder %s477, 1
            %s482 = sphi %s463, %s463
            %s483 = sphi %s464, %s464
          $region263: #{embeddings_forward.1} parent=259 // loop_header_branch
            %480 = sbr.rel (%p478) target = $region267
          $region264: #{embeddings_forward.1} parent=259 // loop_body
            %v484 = vld [vmem:[%s482] sm:%s475]
            %485 = vst [vmem:[%s483] sm:%s475] %v484
          $region265: #{embeddings_forward.1} parent=259 // loop_footer
            %s481 = sadd.s32 1, %s477
          $region266: #{embeddings_forward.1} parent=259 // loop_footer_branch
            %476 = sbr.rel target = $region262
          $region267: #{embeddings_forward.1} parent=259 // loop_exit
            _
        $region260: #{embeddings_forward.1} parent=251 // pred_fallthru
          _
        // Predicated region
        $region279: #{embeddings_forward.1} parent=251 // pred_check
          _
        $region280: #{embeddings_forward.1} parent=251 // pred_check_branch
          %510 = sbr.rel (0) target = $region282
        $region281: #{embeddings_forward.1} parent=251 // pred_region
          %511 = vsyncadd %s465, 16
        $region282: #{embeddings_forward.1} parent=251 // pred_fallthru
          _
      $region252: #{embeddings_forward.1} parent=245 // pred_fallthru
        _
    $region246: #{embeddings_forward.1} parent=1 // loop_footer
      %s425 = sadd.s32 1, %s421
    $region247: #{embeddings_forward.1} parent=1 // loop_footer_branch
      %420 = sbr.rel target = $region243
    $region248: #{embeddings_forward.1} parent=1 // loop_exit
      _
    %v512 = vld [vmem:[#allocation2] sm:$0xff]
    %v513 = vld [vmem:[#allocation2 + $0x8] sm:$0xff]
    %v514 = vmul.f32 %v512, 5.656854
    %v515 = vmul.f32 %v513, 5.656854
    %vm516 = vcmask 261120
    %517 = vst.msk [vmem:[#allocation6] sm:$0xff] %vm516, %v514
    %518 = vst.msk [vmem:[#allocation6 + $0x8] sm:$0xff] %vm516, %v515
    // Predicated region
    $region283: #{embeddings_forward.1} parent=1 // pred_check
      _
    $region284: #{embeddings_forward.1} parent=1 // pred_check_branch
      %520 = sbr.rel (0) target = $region286
    $region285: #{embeddings_forward.1} parent=1 // pred_region
      %s522 = ssub.s32 256, 256
      %523 = vsyncadd [#allocation7], %s522
      %s524 = sshll.u32 [#allocation6], 4
      %s525 = int_to_ptr.vmem [resolvable:$true] %s524
      %530 = dma.vmem_to_hbm [thread:$0]  %s525, 256, %s2, [#allocation7], 128, 128, 8
    $region286: #{embeddings_forward.1} parent=1 // pred_fallthru
      _
    // Predicated region
    $region287: #{embeddings_forward.1} parent=1 // pred_check
      _
    $region288: #{embeddings_forward.1} parent=1 // pred_check_branch
      %532 = sbr.rel (0) target = $region290
    $region289: #{embeddings_forward.1} parent=1 // pred_region
      %533 = dma.done [#allocation7], 256
    $region290: #{embeddings_forward.1} parent=1 // pred_fallthru
      _
    %534 = vsyncpa [#allocation7], 1
  %535 = vsyncmov [#allocation3]
  %s536 = vpop.sfrf %535
  %p537 = scmp.eq.s32.totalorder %s536, 0
  %p538 = pneg %p537
  %540 = shalt.err (%p538)
  %s541 = scalar_lea.sflag [#allocation3], 1
  %542 = vsyncmov %s541
  %s543 = vpop.sfrf %542
  %p544 = scmp.eq.s32.totalorder %s543, 0
  %p545 = pneg %p544
  %547 = shalt.err (%p545)
  %s548 = scalar_lea.sflag [#allocation3], 2
  %549 = vsyncmov %s548
  %s550 = vpop.sfrf %549
  %p551 = scmp.eq.s32.totalorder %s550, 0
  %p552 = pneg %p551
  %554 = shalt.err (%p552)
  %s555 = scalar_lea.sflag [#allocation3], 3
  %556 = vsyncmov %s555
  %s557 = vpop.sfrf %556
  %p558 = scmp.eq.s32.totalorder %s557, 0
  %p559 = pneg %p558
  %561 = shalt.err (%p559)
  %s562 = scalar_lea.sflag [#allocation3], 4
  %563 = vsyncmov %s562
  %s564 = vpop.sfrf %563
  %p565 = scmp.eq.s32.totalorder %s564, 0
  %p566 = pneg %p565
  %568 = shalt.err (%p566)
  %s569 = scalar_lea.sflag [#allocation3], 5
  %570 = vsyncmov %s569
  %s571 = vpop.sfrf %570
  %p572 = scmp.eq.s32.totalorder %s571, 0
  %p573 = pneg %p572
  %575 = shalt.err (%p573)
  %s576 = scalar_lea.sflag [#allocation3], 6
  %577 = vsyncmov %s576
  %s578 = vpop.sfrf %577
  %p579 = scmp.eq.s32.totalorder %s578, 0
  %p580 = pneg %p579
  %582 = shalt.err (%p580)
  %s583 = scalar_lea.sflag [#allocation3], 7
  %584 = vsyncmov %s583
  %s585 = vpop.sfrf %584
  %p586 = scmp.eq.s32.totalorder %s585, 0
  %p587 = pneg %p586
  %589 = shalt.err (%p587)

</llo_original>
